<compile_context>
chip_gen: v5e
topology: v5e:2x2
jax: 0.10.0
libtpu: 0.0.40
codegen_flags: <defaults>
</compile_context>

<pallas_src>
import functools

import jax
import jax.numpy as jnp
from jax.experimental import pallas as pl
from jax.experimental.pallas import tpu as pltpu

DIMS = [6, 128, 64, 32, 16, 8, 1]
FLOPS_PER_ROW = 2 * sum(DIMS[i] * DIMS[i + 1] for i in range(len(DIMS) - 1))  # 23312


def _round_up(v, m):
    return ((v + m - 1) // m) * m


def mlp_kernel(x_ref,
               w1, w2, b2, w3, b3, w4, b4, w5, b5, w6, b6,
               o_ref):
    """Fused 6-layer MLP on one (features, TILE_B) batch tile.

    x_ref: (7, TILE_B) f32 — rows 0..5 are features, row 6 is a constant 1.0 so the
    layer-1 bias (folded into w1's 7th column) rides the MXU instead of the VPU.
    Remaining weights are (out, in) bf16, biases (out, 1) f32; each layer is
    W @ h + b with the batch dimension as the large MXU N dimension.
    """

    def layer(w_ref, b_ref, h, relu):
        acc = jnp.dot(w_ref[...], h, preferred_element_type=jnp.float32)
        acc = acc + b_ref[...]                        # (out, 1) broadcasts over lanes
        if relu:
            acc = jnp.maximum(acc, 0.0)
        return acc

    # Layer 1: f32 operands (K=7 is negligible MXU work), bias folded into the matmul.
    h = jnp.dot(w1[...], x_ref[...], preferred_element_type=jnp.float32)   # (128, T)
    h = jnp.maximum(h, 0.0).astype(jnp.bfloat16)

    # TODO(synk): if slot_util shows vld/vst-bound, sub-chunk the batch with an inner
    # lax.fori_loop so intermediates stay in vregs (review: measure before committing).
    h = layer(w2, b2, h, True).astype(jnp.bfloat16)          # (64,  T)
    h = layer(w3, b3, h, True).astype(jnp.bfloat16)          # (32,  T)
    h = layer(w4, b4, h, True).astype(jnp.bfloat16)          # (16,  T)
    h = layer(w5, b5, h, True).astype(jnp.bfloat16)          # (8,   T)
    z = layer(w6, b6, h, False)                              # (1,   T) f32
    o_ref[...] = jax.nn.sigmoid(z)                           # lane-dense store


@functools.partial(jax.jit, static_argnames=("tile_b",))
def mlp_forward(x, params, *, tile_b=8192):
    """x: (B, 6) float32. params: list of 6 (w, b) with w (out, in) f32, b (out,) f32.

    Returns (B, 1) float32, matching the PyTorch module's forward.
    """
    B = x.shape[0]

    # Shrink the tile so large batches always produce >= 2 grid steps (v7x: 2 TCs),
    # while tiny batches fall back to a single 128-lane tile.
    eff_tile = min(tile_b, max(128, _round_up(pl.cdiv(B, 2), 128)))
    num_tiles = pl.cdiv(B, eff_tile)
    b_pad = num_tiles * eff_tile

    # (features, batch) layout with a constant-1 row appended for the folded layer-1
    # bias. Single fused transpose+concat+pad — no zeros+scatter full-buffer init.
    # (allow_input_fusion=[...] could fuse this into the pallas_call operand entirely.)
    x_t = jnp.concatenate([x.T, jnp.ones((1, B), x.dtype)], axis=0)       # (7, B)
    x_t = jnp.pad(x_t, ((0, 0), (0, b_pad - B))).astype(jnp.float32)      # (7, b_pad)

    # Layer-1 weight with bias folded in as the 7th column, kept f32.
    w1, b1 = params[0]
    w1_aug = jnp.concatenate(
        [w1.astype(jnp.float32), b1.reshape(-1, 1).astype(jnp.float32)], axis=1)

    flat_args = [w1_aug]
    in_specs = [pl.BlockSpec((DIMS[0] + 1, eff_tile), lambda i: (0, i)),
                pl.BlockSpec(w1_aug.shape, lambda i: (0, 0))]
    for w, b in params[1:]:
        wt = w.astype(jnp.bfloat16)                 # bf16 MXU operands, f32 accumulate
        bt = b.reshape(-1, 1).astype(jnp.float32)   # (out, 1): broadcasts over lanes
        flat_args += [wt, bt]
        # Constant index_map -> parameters fetched once and stay VMEM-resident.
        in_specs += [pl.BlockSpec(wt.shape, lambda i: (0, 0)),
                     pl.BlockSpec(bt.shape, lambda i: (0, 0))]

    param_bytes = sum(a.size * a.dtype.itemsize for a in flat_args)
    cost = pl.CostEstimate(
        flops=FLOPS_PER_ROW * b_pad,
        transcendentals=b_pad,                        # sigmoid exp per output row
        bytes_accessed=b_pad * ((DIMS[0] + 1) * 4 + 4) + param_bytes,
    )

    out = pl.pallas_call(
        mlp_kernel,
        out_shape=jax.ShapeDtypeStruct((1, b_pad), jnp.float32),
        grid_spec=pltpu.PrefetchScalarGridSpec(
            num_scalar_prefetch=0,
            grid=(num_tiles,),
            in_specs=in_specs,
            out_specs=pl.BlockSpec((1, eff_tile), lambda i: (0, i)),
        ),
        compiler_params=pltpu.CompilerParams(
            dimension_semantics=("parallel",),
            vmem_limit_bytes=32 * 1024 * 1024,   # headroom on v7x (64 MiB physical)
        ),
        cost_estimate=cost,
    )(x_t, *flat_args)

    # (1, b_pad) lane-dense slab -> (B, 1) logical output.
    return out[0, :B].reshape(B, 1)


def init_params(key):
    """PyTorch nn.Linear default init: uniform(+/- 1/sqrt(fan_in)), w stored (out, in)."""
    params = []
    for i in range(len(DIMS) - 1):
        fan_in, fan_out = DIMS[i], DIMS[i + 1]
        key, kw, kb = jax.random.split(key, 3)
        bound = 1.0 / (fan_in ** 0.5)
        w = jax.random.uniform(kw, (fan_out, fan_in), jnp.float32, -bound, bound)
        b = jax.random.uniform(kb, (fan_out,), jnp.float32, -bound, bound)
        params.append((w, b))
    return params


def reference_forward(x, params):
    """Pure-JAX f32 reference matching the PyTorch module."""
    h = x
    n = len(params)
    for idx, (w, b) in enumerate(params):
        h = h @ w.T + b
        if idx < n - 1:
            h = jnp.maximum(h, 0.0)
    return jax.nn.sigmoid(h)


if __name__ == "__main__":
    key = jax.random.PRNGKey(0)
    key, kx = jax.random.split(key)
    batch = 8
    x = jax.random.normal(kx, (batch, 6), jnp.float32)

    params = init_params(key)

    out = mlp_forward(x, params)
    out = jax.block_until_ready(out)

    ref = reference_forward(x, params)
    assert out.shape == (batch, 1), out.shape
    # bf16 MXU operands (layers 2-6) with f32 accumulation: small quantization error.
    assert jnp.allclose(out, ref, atol=2e-2, rtol=2e-2), jnp.max(jnp.abs(out - ref))

    print("KERNEL_OK")
</pallas_src>

<mosaic_0001>
module attributes {stable_mosaic.version = 11 : i64} {
  func.func @mlp_kernel(%arg0: i32, %arg1: memref<7x128xf32, #tpu.memory_space<vmem>>, %arg2: memref<128x7xf32, #tpu.memory_space<vmem>>, %arg3: memref<64x128xbf16, #tpu.memory_space<vmem>>, %arg4: memref<64x1xf32, #tpu.memory_space<vmem>>, %arg5: memref<32x64xbf16, #tpu.memory_space<vmem>>, %arg6: memref<32x1xf32, #tpu.memory_space<vmem>>, %arg7: memref<16x32xbf16, #tpu.memory_space<vmem>>, %arg8: memref<16x1xf32, #tpu.memory_space<vmem>>, %arg9: memref<8x16xbf16, #tpu.memory_space<vmem>>, %arg10: memref<8x1xf32, #tpu.memory_space<vmem>>, %arg11: memref<1x8xbf16, #tpu.memory_space<vmem>>, %arg12: memref<1x1xf32, #tpu.memory_space<vmem>>, %arg13: memref<1x128xf32, #tpu.memory_space<vmem>>) attributes {dimension_semantics = [#tpu.dimension_semantics<parallel>], iteration_bounds = array<i64: 1>, scalar_prefetch = 0 : i64, scratch_operands = 0 : i64, tpu.core_type = #tpu.core_type<tc>, window_params = [{transform_indices = @transform_0, window_bounds = array<i64: 7, 128>}, {pipeline_mode = #tpu.pipeline_mode<synchronous>, transform_indices = @transform_1, window_bounds = array<i64: 128, 7>}, {pipeline_mode = #tpu.pipeline_mode<synchronous>, transform_indices = @transform_2, window_bounds = array<i64: 64, 128>}, {pipeline_mode = #tpu.pipeline_mode<synchronous>, transform_indices = @transform_3, window_bounds = array<i64: 64, 1>}, {pipeline_mode = #tpu.pipeline_mode<synchronous>, transform_indices = @transform_4, window_bounds = array<i64: 32, 64>}, {pipeline_mode = #tpu.pipeline_mode<synchronous>, transform_indices = @transform_5, window_bounds = array<i64: 32, 1>}, {pipeline_mode = #tpu.pipeline_mode<synchronous>, transform_indices = @transform_6, window_bounds = array<i64: 16, 32>}, {pipeline_mode = #tpu.pipeline_mode<synchronous>, transform_indices = @transform_7, window_bounds = array<i64: 16, 1>}, {pipeline_mode = #tpu.pipeline_mode<synchronous>, transform_indices = @transform_8, window_bounds = array<i64: 8, 16>}, {pipeline_mode = #tpu.pipeline_mode<synchronous>, transform_indices = @transform_9, window_bounds = array<i64: 8, 1>}, {pipeline_mode = #tpu.pipeline_mode<synchronous>, transform_indices = @transform_10, window_bounds = array<i64: 1, 8>}, {pipeline_mode = #tpu.pipeline_mode<synchronous>, transform_indices = @transform_11, window_bounds = array<i64: 1, 1>}, {transform_indices = @transform_12, window_bounds = array<i64: 1, 128>}]} {
    %c0 = arith.constant 0 : index
    %c0_0 = arith.constant 0 : index
    %0 = vector.load %arg2[%c0, %c0_0] : memref<128x7xf32, #tpu.memory_space<vmem>>, vector<128x7xf32>
    %c0_1 = arith.constant 0 : index
    %c0_2 = arith.constant 0 : index
    %1 = vector.load %arg1[%c0_1, %c0_2] : memref<7x128xf32, #tpu.memory_space<vmem>>, vector<7x128xf32>
    %cst = arith.constant dense<0.000000e+00> : vector<128x128xf32>
    %2 = tpu.matmul %0, %1, %cst {dimension_numbers = #tpu.dot_dimension_numbers<[1], [0], [0], [1], [0, 0, 1, 1], [], []>} : vector<128x7xf32>, vector<7x128xf32>, vector<128x128xf32> -> vector<128x128xf32>
    %cst_3 = arith.constant 0.000000e+00 : f32
    %3 = vector.broadcast %cst_3 : f32 to vector<128x128xf32>
    %4 = arith.maximumf %2, %3 : vector<128x128xf32>
    %5 = arith.truncf %4 : vector<128x128xf32> to vector<128x128xbf16>
    %c0_4 = arith.constant 0 : index
    %c0_5 = arith.constant 0 : index
    %6 = vector.load %arg3[%c0_4, %c0_5] : memref<64x128xbf16, #tpu.memory_space<vmem>>, vector<64x128xbf16>
    %cst_6 = arith.constant dense<0.000000e+00> : vector<64x128xf32>
    %7 = tpu.matmul %6, %5, %cst_6 {dimension_numbers = #tpu.dot_dimension_numbers<[1], [0], [0], [1], [0, 0, 1, 1], [], []>} : vector<64x128xbf16>, vector<128x128xbf16>, vector<64x128xf32> -> vector<64x128xf32>
    %c0_7 = arith.constant 0 : index
    %c0_8 = arith.constant 0 : index
    %8 = vector.load %arg4[%c0_7, %c0_8] : memref<64x1xf32, #tpu.memory_space<vmem>>, vector<64x1xf32>
    %9 = vector.broadcast %8 : vector<64x1xf32> to vector<64x128xf32>
    %10 = arith.addf %7, %9 : vector<64x128xf32>
    %cst_9 = arith.constant 0.000000e+00 : f32
    %11 = vector.broadcast %cst_9 : f32 to vector<64x128xf32>
    %12 = arith.maximumf %10, %11 : vector<64x128xf32>
    %13 = arith.truncf %12 : vector<64x128xf32> to vector<64x128xbf16>
    %c0_10 = arith.constant 0 : index
    %c0_11 = arith.constant 0 : index
    %14 = vector.load %arg5[%c0_10, %c0_11] : memref<32x64xbf16, #tpu.memory_space<vmem>>, vector<32x64xbf16>
    %cst_12 = arith.constant dense<0.000000e+00> : vector<32x128xf32>
    %15 = tpu.matmul %14, %13, %cst_12 {dimension_numbers = #tpu.dot_dimension_numbers<[1], [0], [0], [1], [0, 0, 1, 1], [], []>} : vector<32x64xbf16>, vector<64x128xbf16>, vector<32x128xf32> -> vector<32x128xf32>
    %c0_13 = arith.constant 0 : index
    %c0_14 = arith.constant 0 : index
    %16 = vector.load %arg6[%c0_13, %c0_14] : memref<32x1xf32, #tpu.memory_space<vmem>>, vector<32x1xf32>
    %17 = vector.broadcast %16 : vector<32x1xf32> to vector<32x128xf32>
    %18 = arith.addf %15, %17 : vector<32x128xf32>
    %cst_15 = arith.constant 0.000000e+00 : f32
    %19 = vector.broadcast %cst_15 : f32 to vector<32x128xf32>
    %20 = arith.maximumf %18, %19 : vector<32x128xf32>
    %21 = arith.truncf %20 : vector<32x128xf32> to vector<32x128xbf16>
    %c0_16 = arith.constant 0 : index
    %c0_17 = arith.constant 0 : index
    %22 = vector.load %arg7[%c0_16, %c0_17] : memref<16x32xbf16, #tpu.memory_space<vmem>>, vector<16x32xbf16>
    %cst_18 = arith.constant dense<0.000000e+00> : vector<16x128xf32>
    %23 = tpu.matmul %22, %21, %cst_18 {dimension_numbers = #tpu.dot_dimension_numbers<[1], [0], [0], [1], [0, 0, 1, 1], [], []>} : vector<16x32xbf16>, vector<32x128xbf16>, vector<16x128xf32> -> vector<16x128xf32>
    %c0_19 = arith.constant 0 : index
    %c0_20 = arith.constant 0 : index
    %24 = vector.load %arg8[%c0_19, %c0_20] : memref<16x1xf32, #tpu.memory_space<vmem>>, vector<16x1xf32>
    %25 = vector.broadcast %24 : vector<16x1xf32> to vector<16x128xf32>
    %26 = arith.addf %23, %25 : vector<16x128xf32>
    %cst_21 = arith.constant 0.000000e+00 : f32
    %27 = vector.broadcast %cst_21 : f32 to vector<16x128xf32>
    %28 = arith.maximumf %26, %27 : vector<16x128xf32>
    %29 = arith.truncf %28 : vector<16x128xf32> to vector<16x128xbf16>
    %c0_22 = arith.constant 0 : index
    %c0_23 = arith.constant 0 : index
    %30 = vector.load %arg9[%c0_22, %c0_23] : memref<8x16xbf16, #tpu.memory_space<vmem>>, vector<8x16xbf16>
    %cst_24 = arith.constant dense<0.000000e+00> : vector<8x128xf32>
    %31 = tpu.matmul %30, %29, %cst_24 {dimension_numbers = #tpu.dot_dimension_numbers<[1], [0], [0], [1], [0, 0, 1, 1], [], []>} : vector<8x16xbf16>, vector<16x128xbf16>, vector<8x128xf32> -> vector<8x128xf32>
    %c0_25 = arith.constant 0 : index
    %c0_26 = arith.constant 0 : index
    %32 = vector.load %arg10[%c0_25, %c0_26] : memref<8x1xf32, #tpu.memory_space<vmem>>, vector<8x1xf32>
    %33 = vector.broadcast %32 : vector<8x1xf32> to vector<8x128xf32>
    %34 = arith.addf %31, %33 : vector<8x128xf32>
    %cst_27 = arith.constant 0.000000e+00 : f32
    %35 = vector.broadcast %cst_27 : f32 to vector<8x128xf32>
    %36 = arith.maximumf %34, %35 : vector<8x128xf32>
    %37 = arith.truncf %36 : vector<8x128xf32> to vector<8x128xbf16>
    %c0_28 = arith.constant 0 : index
    %c0_29 = arith.constant 0 : index
    %38 = vector.load %arg11[%c0_28, %c0_29] : memref<1x8xbf16, #tpu.memory_space<vmem>>, vector<1x8xbf16>
    %cst_30 = arith.constant dense<0.000000e+00> : vector<1x128xf32>
    %39 = tpu.matmul %38, %37, %cst_30 {dimension_numbers = #tpu.dot_dimension_numbers<[1], [0], [0], [1], [0, 0, 1, 1], [], []>} : vector<1x8xbf16>, vector<8x128xbf16>, vector<1x128xf32> -> vector<1x128xf32>
    %c0_31 = arith.constant 0 : index
    %c0_32 = arith.constant 0 : index
    %40 = vector.load %arg12[%c0_31, %c0_32] : memref<1x1xf32, #tpu.memory_space<vmem>>, vector<1x1xf32>
    %41 = vector.broadcast %40 : vector<1x1xf32> to vector<1x128xf32>
    %42 = arith.addf %39, %41 : vector<1x128xf32>
    %43 = arith.negf %42 : vector<1x128xf32>
    %44 = math.exp %43 : vector<1x128xf32>
    %cst_33 = arith.constant 1.000000e+00 : f32
    %45 = vector.broadcast %cst_33 : f32 to vector<1x128xf32>
    %46 = arith.addf %45, %44 : vector<1x128xf32>
    %47 = arith.divf %45, %46 : vector<1x128xf32>
    %c0_34 = arith.constant 0 : index
    %c0_35 = arith.constant 0 : index
    %48 = vector.load %arg13[%c0_34, %c0_35] : memref<1x128xf32, #tpu.memory_space<vmem>>, vector<1x128xf32>
    tpu.vector_store %arg13[%c0_34, %c0_35], %47 {strides = array<i32>} : memref<1x128xf32, #tpu.memory_space<vmem>>, vector<1x128xf32>,
    return
  }
  func.func @transform_0(%arg0: i32) -> (i32, i32) {
    %c0_i32 = arith.constant 0 : i32
    %c0_i32_0 = arith.constant 0 : i32
    return %c0_i32, %arg0 : i32, i32
  }
  func.func @transform_1(%arg0: i32) -> (i32, i32) {
    %c0_i32 = arith.constant 0 : i32
    %c0_i32_0 = arith.constant 0 : i32
    %c0_i32_1 = arith.constant 0 : i32
    return %c0_i32, %c0_i32_0 : i32, i32
  }
  func.func @transform_2(%arg0: i32) -> (i32, i32) {
    %c0_i32 = arith.constant 0 : i32
    %c0_i32_0 = arith.constant 0 : i32
    %c0_i32_1 = arith.constant 0 : i32
    return %c0_i32, %c0_i32_0 : i32, i32
  }
  func.func @transform_3(%arg0: i32) -> (i32, i32) {
    %c0_i32 = arith.constant 0 : i32
    %c0_i32_0 = arith.constant 0 : i32
    %c0_i32_1 = arith.constant 0 : i32
    return %c0_i32, %c0_i32_0 : i32, i32
  }
  func.func @transform_4(%arg0: i32) -> (i32, i32) {
    %c0_i32 = arith.constant 0 : i32
    %c0_i32_0 = arith.constant 0 : i32
    %c0_i32_1 = arith.constant 0 : i32
    return %c0_i32, %c0_i32_0 : i32, i32
  }
  func.func @transform_5(%arg0: i32) -> (i32, i32) {
    %c0_i32 = arith.constant 0 : i32
    %c0_i32_0 = arith.constant 0 : i32
    %c0_i32_1 = arith.constant 0 : i32
    return %c0_i32, %c0_i32_0 : i32, i32
  }
  func.func @transform_6(%arg0: i32) -> (i32, i32) {
    %c0_i32 = arith.constant 0 : i32
    %c0_i32_0 = arith.constant 0 : i32
    %c0_i32_1 = arith.constant 0 : i32
    return %c0_i32, %c0_i32_0 : i32, i32
  }
  func.func @transform_7(%arg0: i32) -> (i32, i32) {
    %c0_i32 = arith.constant 0 : i32
    %c0_i32_0 = arith.constant 0 : i32
    %c0_i32_1 = arith.constant 0 : i32
    return %c0_i32, %c0_i32_0 : i32, i32
  }
  func.func @transform_8(%arg0: i32) -> (i32, i32) {
    %c0_i32 = arith.constant 0 : i32
    %c0_i32_0 = arith.constant 0 : i32
    %c0_i32_1 = arith.constant 0 : i32
    return %c0_i32, %c0_i32_0 : i32, i32
  }
  func.func @transform_9(%arg0: i32) -> (i32, i32) {
    %c0_i32 = arith.constant 0 : i32
    %c0_i32_0 = arith.constant 0 : i32
    %c0_i32_1 = arith.constant 0 : i32
    return %c0_i32, %c0_i32_0 : i32, i32
  }
  func.func @transform_10(%arg0: i32) -> (i32, i32) {
    %c0_i32 = arith.constant 0 : i32
    %c0_i32_0 = arith.constant 0 : i32
    %c0_i32_1 = arith.constant 0 : i32
    return %c0_i32, %c0_i32_0 : i32, i32
  }
  func.func @transform_11(%arg0: i32) -> (i32, i32) {
    %c0_i32 = arith.constant 0 : i32
    %c0_i32_0 = arith.constant 0 : i32
    %c0_i32_1 = arith.constant 0 : i32
    return %c0_i32, %c0_i32_0 : i32, i32
  }
  func.func @transform_12(%arg0: i32) -> (i32, i32) {
    %c0_i32 = arith.constant 0 : i32
    %c0_i32_0 = arith.constant 0 : i32
    return %c0_i32, %arg0 : i32, i32
  }
}

</mosaic_0001>

<llo_original>
// kernel: mlp_forward.1
$region0: #{mlp_forward.1}
  #allocation0 [shape = 'u32[]', space=smem, size = 0x4, offset = 0x4, fixed_abs, tag = 'smem constant byte address 0x4 - core index']
  #allocation1 [shape = 'u32[72,128]{1,0:T(1,128)}', space=vmem, size = 0x9000, scoped, tag = 'internal scratch']
  #allocation2 [shape = 'f32[1,1]{1,0:T(1,128)S(1)}', space=vmem, size = 0x200, scoped, tag = 'scoped memory for mlp_forward.1']
  %s0 = inlined_call_operand.vmem [shape: f32[7,128], index: 0, kind: input, shape index: {}]
  %s1 = inlined_call_operand.vmem [shape: f32[128,7], index: 1, kind: input, shape index: {}]
  %s2 = inlined_call_operand.vmem [shape: bf16[64,128], index: 2, kind: input, shape index: {}]
  %s3 = inlined_call_operand.vmem [shape: f32[64,1], index: 3, kind: input, shape index: {}]
  %s4 = inlined_call_operand.vmem [shape: bf16[32,64], index: 4, kind: input, shape index: {}]
  %s5 = inlined_call_operand.vmem [shape: f32[32,1], index: 5, kind: input, shape index: {}]
  %s6 = inlined_call_operand.vmem [shape: bf16[16,32], index: 6, kind: input, shape index: {}]
  %s7 = inlined_call_operand.vmem [shape: f32[16,1], index: 7, kind: input, shape index: {}]
  %s8 = inlined_call_operand.vmem [shape: bf16[8,16], index: 8, kind: input, shape index: {}]
  %s9 = inlined_call_operand.vmem [shape: f32[8,1], index: 9, kind: input, shape index: {}]
  %s10 = inlined_call_operand.vmem [shape: bf16[1,8], index: 10, kind: input, shape index: {}]
  %s11 = inlined_call_operand.<no memory space> [shape: f32[1,1], index: 11, kind: input, shape index: {}]
  %s12 = inlined_call_operand.vmem [shape: f32[1,128], index: 12, kind: output, shape index: {}]
  %s13 = sld [smem:[#allocation0]]
  $region58: #{mlp_forward.1} parent=0
    _
  %s15 = ssub.s32 1, %s13
  %s16 = scalar_select 0, %s15, %s13
  %v17 = vstv %s11
  %18 = vst [vmem:[#allocation2] sm:$0x1] %v17
  // Predicated region
  $region2: #{mlp_forward.1} parent=0 // pred_check
    _
  $region3: #{mlp_forward.1} parent=0 // pred_check_branch
    %20 = sbr.rel (0) target = $region5
  $region4: #{mlp_forward.1} parent=0 // pred_region
    _
  $region5: #{mlp_forward.1} parent=0 // pred_fallthru
    _
  // Predicated region
  $region6: #{mlp_forward.1} parent=0 // pred_check
    _
  $region7: #{mlp_forward.1} parent=0 // pred_check_branch
    %22 = sbr.rel (0) target = $region9
  $region8: #{mlp_forward.1} parent=0 // pred_region
    _
  $region9: #{mlp_forward.1} parent=0 // pred_fallthru
    _
  // Predicated region
  $region10: #{mlp_forward.1} parent=0 // pred_check
    _
  $region11: #{mlp_forward.1} parent=0 // pred_check_branch
    %24 = sbr.rel (0) target = $region13
  $region12: #{mlp_forward.1} parent=0 // pred_region
    _
  $region13: #{mlp_forward.1} parent=0 // pred_fallthru
    _
  // Predicated region
  $region14: #{mlp_forward.1} parent=0 // pred_check
    _
  $region15: #{mlp_forward.1} parent=0 // pred_check_branch
    %26 = sbr.rel (0) target = $region17
  $region16: #{mlp_forward.1} parent=0 // pred_region
    _
  $region17: #{mlp_forward.1} parent=0 // pred_fallthru
    _
  // Predicated region
  $region18: #{mlp_forward.1} parent=0 // pred_check
    _
  $region19: #{mlp_forward.1} parent=0 // pred_check_branch
    %28 = sbr.rel (0) target = $region21
  $region20: #{mlp_forward.1} parent=0 // pred_region
    _
  $region21: #{mlp_forward.1} parent=0 // pred_fallthru
    _
  // Predicated region
  $region22: #{mlp_forward.1} parent=0 // pred_check
    _
  $region23: #{mlp_forward.1} parent=0 // pred_check_branch
    %30 = sbr.rel (0) target = $region25
  $region24: #{mlp_forward.1} parent=0 // pred_region
    _
  $region25: #{mlp_forward.1} parent=0 // pred_fallthru
    _
  // Predicated region
  $region26: #{mlp_forward.1} parent=0 // pred_check
    _
  $region27: #{mlp_forward.1} parent=0 // pred_check_branch
    %32 = sbr.rel (0) target = $region29
  $region28: #{mlp_forward.1} parent=0 // pred_region
    _
  $region29: #{mlp_forward.1} parent=0 // pred_fallthru
    _
  // Predicated region
  $region30: #{mlp_forward.1} parent=0 // pred_check
    _
  $region31: #{mlp_forward.1} parent=0 // pred_check_branch
    %34 = sbr.rel (0) target = $region33
  $region32: #{mlp_forward.1} parent=0 // pred_region
    _
  $region33: #{mlp_forward.1} parent=0 // pred_fallthru
    _
  // Predicated region
  $region34: #{mlp_forward.1} parent=0 // pred_check
    _
  $region35: #{mlp_forward.1} parent=0 // pred_check_branch
    %36 = sbr.rel (0) target = $region37
  $region36: #{mlp_forward.1} parent=0 // pred_region
    _
  $region37: #{mlp_forward.1} parent=0 // pred_fallthru
    _
  // Predicated region
  $region38: #{mlp_forward.1} parent=0 // pred_check
    _
  $region39: #{mlp_forward.1} parent=0 // pred_check_branch
    %38 = sbr.rel (0) target = $region41
  $region40: #{mlp_forward.1} parent=0 // pred_region
    _
  $region41: #{mlp_forward.1} parent=0 // pred_fallthru
    _
  // Predicated region
  $region42: #{mlp_forward.1} parent=0 // pred_check
    _
  $region43: #{mlp_forward.1} parent=0 // pred_check_branch
    %40 = sbr.rel (0) target = $region45
  $region44: #{mlp_forward.1} parent=0 // pred_region
    _
  $region45: #{mlp_forward.1} parent=0 // pred_fallthru
    _
  // Predicated region
  $region46: #{mlp_forward.1} parent=0 // pred_check
    _
  $region47: #{mlp_forward.1} parent=0 // pred_check_branch
    %42 = sbr.rel (0) target = $region49
  $region48: #{mlp_forward.1} parent=0 // pred_region
    _
  $region49: #{mlp_forward.1} parent=0 // pred_fallthru
    _
  %v44 = vld [vmem:[%s1] sm:$0xff]
  %v45 = vld [vmem:[%s1 + $0x8] sm:$0xff]
  %v46 = vld [vmem:[%s1 + $0x10] sm:$0xff]
  %v47 = vld [vmem:[%s1 + $0x18] sm:$0xff]
  %v48 = vld [vmem:[%s1 + $0x20] sm:$0xff]
  %v49 = vld [vmem:[%s1 + $0x28] sm:$0xff]
  %v50 = vld [vmem:[%s1 + $0x30] sm:$0xff]
  %v51 = vld [vmem:[%s1 + $0x38] sm:$0xff]
  %v52 = vld [vmem:[%s1 + $0x40] sm:$0xff]
  %v53 = vld [vmem:[%s1 + $0x48] sm:$0xff]
  %v54 = vld [vmem:[%s1 + $0x50] sm:$0xff]
  %v55 = vld [vmem:[%s1 + $0x58] sm:$0xff]
  %v56 = vld [vmem:[%s1 + $0x60] sm:$0xff]
  %v57 = vld [vmem:[%s1 + $0x68] sm:$0xff]
  %v58 = vld [vmem:[%s1 + $0x70] sm:$0xff]
  %v59 = vld [vmem:[%s1 + $0x78] sm:$0xff]
  %v60 = vld [vmem:[%s0] sm:$0x7f]
  %vm61 = vcmask 56320
  %v63 = vsel %vm61, %v44, 0
  %v66 = vsel %vm61, %v45, 0
  %v69 = vsel %vm61, %v46, 0
  %v72 = vsel %vm61, %v47, 0
  %v75 = vsel %vm61, %v48, 0
  %v78 = vsel %vm61, %v49, 0
  %v81 = vsel %vm61, %v50, 0
  %v84 = vsel %vm61, %v51, 0
  %v87 = vsel %vm61, %v52, 0
  %v90 = vsel %vm61, %v53, 0
  %v93 = vsel %vm61, %v54, 0
  %v96 = vsel %vm61, %v55, 0
  %v99 = vsel %vm61, %v56, 0
  %v102 = vsel %vm61, %v57, 0
  %v105 = vsel %vm61, %v58, 0
  %v108 = vsel %vm61, %v59, 0
  %vm110 = vcmask 1046528
  %v112 = vsel %vm110, %v60, 0
  %114 = vmatpush.msra.mxu0 0.0
  %115 = vmatpush.msra.mxu0 0.0
  %116 = vmatpush.msra.mxu0 0.0
  %117 = vmatpush.msra.mxu0 0.0
  %118 = vmatpush.msra.mxu0 0.0
  %119 = vmatpush.msra.mxu0 0.0
  %120 = vmatpush.msra.mxu0 0.0
  %121 = vmatpush.msra.mxu0 0.0
  %122 = vmatpush.msra.mxu0 0.0
  %123 = vmatpush.msra.mxu0 0.0
  %124 = vmatpush.msra.mxu0 0.0
  %125 = vmatpush.msra.mxu0 0.0
  %126 = vmatpush.msra.mxu0 0.0
  %127 = vmatpush.msra.mxu0 0.0
  %128 = vmatpush.msra.mxu0 0.0
  %129 = vmatpush.msra.mxu0 %v112
  %130 = vmatmul.f32.gmra.mxu0 %v63
  %v131 = vpop.f32.mrf.mxu0
  %v132 = vadd.f32 0.0, %v131
  %133 = vmatmul.f32.gmra.mxu0 %v66
  %v134 = vpop.f32.mrf.mxu0
  %v135 = vadd.f32 0.0, %v134
  %136 = vmatmul.f32.gmra.mxu0 %v69
  %v137 = vpop.f32.mrf.mxu0
  %v138 = vadd.f32 0.0, %v137
  %139 = vmatmul.f32.gmra.mxu0 %v72
  %v140 = vpop.f32.mrf.mxu0
  %v141 = vadd.f32 0.0, %v140
  %142 = vmatmul.f32.gmra.mxu0 %v75
  %v143 = vpop.f32.mrf.mxu0
  %v144 = vadd.f32 0.0, %v143
  %145 = vmatmul.f32.gmra.mxu0 %v78
  %v146 = vpop.f32.mrf.mxu0
  %v147 = vadd.f32 0.0, %v146
  %148 = vmatmul.f32.gmra.mxu0 %v81
  %v149 = vpop.f32.mrf.mxu0
  %v150 = vadd.f32 0.0, %v149
  %151 = vmatmul.f32.gmra.mxu0 %v84
  %v152 = vpop.f32.mrf.mxu0
  %v153 = vadd.f32 0.0, %v152
  %154 = vmatmul.f32.gmra.mxu0 %v87
  %v155 = vpop.f32.mrf.mxu0
  %v156 = vadd.f32 0.0, %v155
  %157 = vmatmul.f32.gmra.mxu0 %v90
  %v158 = vpop.f32.mrf.mxu0
  %v159 = vadd.f32 0.0, %v158
  %160 = vmatmul.f32.gmra.mxu0 %v93
  %v161 = vpop.f32.mrf.mxu0
  %v162 = vadd.f32 0.0, %v161
  %163 = vmatmul.f32.gmra.mxu0 %v96
  %v164 = vpop.f32.mrf.mxu0
  %v165 = vadd.f32 0.0, %v164
  %166 = vmatmul.f32.gmra.mxu0 %v99
  %v167 = vpop.f32.mrf.mxu0
  %v168 = vadd.f32 0.0, %v167
  %169 = vmatmul.f32.gmra.mxu0 %v102
  %v170 = vpop.f32.mrf.mxu0
  %v171 = vadd.f32 0.0, %v170
  %172 = vmatmul.f32.gmra.mxu0 %v105
  %v173 = vpop.f32.mrf.mxu0
  %v174 = vadd.f32 0.0, %v173
  %175 = vmatmul.f32.gmra.mxu0 %v108
  %v176 = vpop.f32.mrf.mxu0
  %v177 = vadd.f32 0.0, %v176
  %178 = vdwg.mxu0
  %v179 = vmax.f32 %v132, 0.0
  %v180 = vmax.f32 %v135, 0.0
  %v181 = vmax.f32 %v138, 0.0
  %v182 = vmax.f32 %v141, 0.0
  %v183 = vmax.f32 %v144, 0.0
  %v184 = vmax.f32 %v147, 0.0
  %v185 = vmax.f32 %v150, 0.0
  %v186 = vmax.f32 %v153, 0.0
  %v187 = vmax.f32 %v156, 0.0
  %v188 = vmax.f32 %v159, 0.0
  %v189 = vmax.f32 %v162, 0.0
  %v190 = vmax.f32 %v165, 0.0
  %v191 = vmax.f32 %v168, 0.0
  %v192 = vmax.f32 %v171, 0.0
  %v193 = vmax.f32 %v174, 0.0
  %v194 = vmax.f32 %v177, 0.0
  %v195 = vpack.c.bf16 %v180, %v179
  %v196 = vpack.c.bf16 %v182, %v181
  %v197 = vpack.c.bf16 %v184, %v183
  %v198 = vpack.c.bf16 %v186, %v185
  %v199 = vpack.c.bf16 %v188, %v187
  %v200 = vpack.c.bf16 %v190, %v189
  %v201 = vpack.c.bf16 %v192, %v191
  %v202 = vpack.c.bf16 %v194, %v193
  %v203 = vld [vmem:[%s2] sm:$0xf]
  %v204 = vld [vmem:[%s2 + $0x4] sm:$0xf]
  %v205 = vld [vmem:[%s2 + $0x8] sm:$0xf]
  %v206 = vld [vmem:[%s2 + $0xc] sm:$0xf]
  %v207 = vld [vmem:[%s2 + $0x10] sm:$0xf]
  %v208 = vld [vmem:[%s2 + $0x14] sm:$0xf]
  %v209 = vld [vmem:[%s2 + $0x18] sm:$0xf]
  %v210 = vld [vmem:[%s2 + $0x1c] sm:$0xf]
  %v211 = vld [vmem:[%s3] sm:$0xff]
  %v212 = vld [vmem:[%s3 + $0x8] sm:$0xff]
  %v213 = vld [vmem:[%s3 + $0x10] sm:$0xff]
  %v214 = vld [vmem:[%s3 + $0x18] sm:$0xff]
  %v215 = vld [vmem:[%s3 + $0x20] sm:$0xff]
  %v216 = vld [vmem:[%s3 + $0x28] sm:$0xff]
  %v217 = vld [vmem:[%s3 + $0x30] sm:$0xff]
  %v218 = vld [vmem:[%s3 + $0x38] sm:$0xff]
  %220 = vset.pattern.permute.xlu0 0
  %221 = vperm.xlu0 %220, %v211
  %v222 = vpop.permute.xlu0 %221
  %225 = vset.pattern.permute.xlu0 0
  %226 = vperm.xlu0 %225, %v212
  %v227 = vpop.permute.xlu0 %226
  %230 = vset.pattern.permute.xlu0 0
  %231 = vperm.xlu0 %230, %v213
  %v232 = vpop.permute.xlu0 %231
  %235 = vset.pattern.permute.xlu0 0
  %236 = vperm.xlu0 %235, %v214
  %v237 = vpop.permute.xlu0 %236
  %240 = vset.pattern.permute.xlu0 0
  %241 = vperm.xlu0 %240, %v215
  %v242 = vpop.permute.xlu0 %241
  %245 = vset.pattern.permute.xlu0 0
  %246 = vperm.xlu0 %245, %v216
  %v247 = vpop.permute.xlu0 %246
  %250 = vset.pattern.permute.xlu0 0
  %251 = vperm.xlu0 %250, %v217
  %v252 = vpop.permute.xlu0 %251
  %255 = vset.pattern.permute.xlu0 0
  %256 = vperm.xlu0 %255, %v218
  %v257 = vpop.permute.xlu0 %256
  %v267 = vunpack.c.l.b16 %v203
  %v268 = vunpack.c.l.b16 %v204
  %v269 = vunpack.c.l.b16 %v205
  %v270 = vunpack.c.l.b16 %v206
  %v271 = vunpack.c.l.b16 %v207
  %v272 = vunpack.c.l.b16 %v208
  %v273 = vunpack.c.l.b16 %v209
  %v274 = vunpack.c.l.b16 %v210
  %v275 = vpack.c.b16 %v268, %v267
  %v276 = vpack.c.b16 %v270, %v269
  %v277 = vpack.c.b16 %v272, %v271
  %v278 = vpack.c.b16 %v274, %v273
  %283 = vmatpush.bf16.msra.mxu0 %v202
  %284 = vmatpush.bf16.msra.mxu0 %v201
  %285 = vmatpush.bf16.msra.mxu0 %v200
  %286 = vmatpush.bf16.msra.mxu0 %v199
  %287 = vmatpush.bf16.msra.mxu0 %v198
  %288 = vmatpush.bf16.msra.mxu0 %v197
  %289 = vmatpush.bf16.msra.mxu0 %v196
  %290 = vmatpush.bf16.msra.mxu0 %v195
  %291 = vmatmul.bf16.gmra.mxu0 %v275
  %v292 = vpop.f32.mrf.mxu0
  %v293 = vadd.f32 %v222, %v292
  %v294 = vpop.f32.mrf.mxu0
  %v295 = vadd.f32 %v227, %v294
  %296 = vmatmul.bf16.gmra.mxu0 %v276
  %v297 = vpop.f32.mrf.mxu0
  %v298 = vadd.f32 %v232, %v297
  %v299 = vpop.f32.mrf.mxu0
  %v300 = vadd.f32 %v237, %v299
  %301 = vmatmul.bf16.gmra.mxu0 %v277
  %v302 = vpop.f32.mrf.mxu0
  %v303 = vadd.f32 %v242, %v302
  %v304 = vpop.f32.mrf.mxu0
  %v305 = vadd.f32 %v247, %v304
  %306 = vmatmul.bf16.gmra.mxu0 %v278
  %v307 = vpop.f32.mrf.mxu0
  %v308 = vadd.f32 %v252, %v307
  %v309 = vpop.f32.mrf.mxu0
  %v310 = vadd.f32 %v257, %v309
  %311 = vdwg.mxu0
  %v312 = vmax.f32 %v293, 0.0
  %v313 = vmax.f32 %v295, 0.0
  %v314 = vmax.f32 %v298, 0.0
  %v315 = vmax.f32 %v300, 0.0
  %v316 = vmax.f32 %v303, 0.0
  %v317 = vmax.f32 %v305, 0.0
  %v318 = vmax.f32 %v308, 0.0
  %v319 = vmax.f32 %v310, 0.0
  %v320 = vpack.c.bf16 %v313, %v312
  %v321 = vpack.c.bf16 %v315, %v314
  %v322 = vpack.c.bf16 %v317, %v316
  %v323 = vpack.c.bf16 %v319, %v318
  %v324 = vld [vmem:[%s4] sm:$0xf]
  %v325 = vld [vmem:[%s4 + $0x4] sm:$0xf]
  %v326 = vld [vmem:[%s4 + $0x8] sm:$0xf]
  %v327 = vld [vmem:[%s4 + $0xc] sm:$0xf]
  %v328 = vld [vmem:[%s5] sm:$0xff]
  %v329 = vld [vmem:[%s5 + $0x8] sm:$0xff]
  %v330 = vld [vmem:[%s5 + $0x10] sm:$0xff]
  %v331 = vld [vmem:[%s5 + $0x18] sm:$0xff]
  %333 = vset.pattern.permute.xlu0 0
  %334 = vperm.xlu0 %333, %v328
  %v335 = vpop.permute.xlu0 %334
  %338 = vset.pattern.permute.xlu0 0
  %339 = vperm.xlu0 %338, %v329
  %v340 = vpop.permute.xlu0 %339
  %343 = vset.pattern.permute.xlu0 0
  %344 = vperm.xlu0 %343, %v330
  %v345 = vpop.permute.xlu0 %344
  %348 = vset.pattern.permute.xlu0 0
  %349 = vperm.xlu0 %348, %v331
  %v350 = vpop.permute.xlu0 %349
  %v356 = vunpack.c.l.b16 %v324
  %v357 = vunpack.c.l.b16 %v325
  %v358 = vunpack.c.l.b16 %v326
  %v359 = vunpack.c.l.b16 %v327
  %v360 = vpack.c.b16 %v357, %v356
  %v361 = vpack.c.b16 %v359, %v358
  %vm362 = vcmask 523264
  %v364 = vsel %vm362, %v360, 0
  %v367 = vsel %vm362, %v361, 0
  %369 = vmatpush.bf16.msra.mxu0 0
  %370 = vmatpush.bf16.msra.mxu0 0
  %371 = vmatpush.bf16.msra.mxu0 0
  %372 = vmatpush.bf16.msra.mxu0 0
  %373 = vmatpush.bf16.msra.mxu0 %v323
  %374 = vmatpush.bf16.msra.mxu0 %v322
  %375 = vmatpush.bf16.msra.mxu0 %v321
  %376 = vmatpush.bf16.msra.mxu0 %v320
  %377 = vmatmul.bf16.gmra.mxu0 %v364
  %v378 = vpop.f32.mrf.mxu0
  %v379 = vadd.f32 %v335, %v378
  %v380 = vpop.f32.mrf.mxu0
  %v381 = vadd.f32 %v340, %v380
  %382 = vmatmul.bf16.gmra.mxu0 %v367
  %v383 = vpop.f32.mrf.mxu0
  %v384 = vadd.f32 %v345, %v383
  %v385 = vpop.f32.mrf.mxu0
  %v386 = vadd.f32 %v350, %v385
  %387 = vdwg.mxu0
  %v388 = vmax.f32 %v379, 0.0
  %v389 = vmax.f32 %v381, 0.0
  %v390 = vmax.f32 %v384, 0.0
  %v391 = vmax.f32 %v386, 0.0
  %v392 = vpack.c.bf16 %v389, %v388
  %v393 = vpack.c.bf16 %v391, %v390
  %v394 = vld [vmem:[%s6] sm:$0xf]
  %v395 = vld [vmem:[%s6 + $0x4] sm:$0xf]
  %v396 = vld [vmem:[%s7] sm:$0xff]
  %v397 = vld [vmem:[%s7 + $0x8] sm:$0xff]
  %399 = vset.pattern.permute.xlu0 0
  %400 = vperm.xlu0 %399, %v396
  %v401 = vpop.permute.xlu0 %400
  %404 = vset.pattern.permute.xlu0 0
  %405 = vperm.xlu0 %404, %v397
  %v406 = vpop.permute.xlu0 %405
  %v410 = vunpack.c.l.b16 %v394
  %v411 = vunpack.c.l.b16 %v395
  %v412 = vpack.c.b16 %v411, %v410
  %vm413 = vcmask 261120
  %v415 = vsel %vm413, %v412, 0
  %417 = vmatpush.bf16.msra.mxu0 0
  %418 = vmatpush.bf16.msra.mxu0 0
  %419 = vmatpush.bf16.msra.mxu0 0
  %420 = vmatpush.bf16.msra.mxu0 0
  %421 = vmatpush.bf16.msra.mxu0 0
  %422 = vmatpush.bf16.msra.mxu0 0
  %423 = vmatpush.bf16.msra.mxu0 %v393
  %424 = vmatpush.bf16.msra.mxu0 %v392
  %425 = vmatmul.bf16.gmra.mxu0 %v415
  %v426 = vpop.f32.mrf.mxu0
  %v427 = vadd.f32 %v401, %v426
  %v428 = vpop.f32.mrf.mxu0
  %v429 = vadd.f32 %v406, %v428
  %430 = vdwg.mxu0
  %v431 = vmax.f32 %v427, 0.0
  %v432 = vmax.f32 %v429, 0.0
  %v433 = vpack.c.bf16 %v432, %v431
  %v434 = vld [vmem:[%s8] sm:$0xf]
  %v435 = vld [vmem:[%s9] sm:$0xff]
  %437 = vset.pattern.permute.xlu0 0
  %438 = vperm.xlu0 %437, %v435
  %v439 = vpop.permute.xlu0 %438
  %vm441 = vcmask 130048
  %v443 = vsel %vm441, %v434, 0
  %445 = vmatpush.bf16.msra.mxu0 0
  %446 = vmatpush.bf16.msra.mxu0 0
  %447 = vmatpush.bf16.msra.mxu0 0
  %448 = vmatpush.bf16.msra.mxu0 0
  %449 = vmatpush.bf16.msra.mxu0 0
  %450 = vmatpush.bf16.msra.mxu0 0
  %451 = vmatpush.bf16.msra.mxu0 0
  %452 = vmatpush.bf16.msra.mxu0 %v433
  %453 = vmatmul.bf16.gmra.mxu0 %v443
  %v454 = vpop.f32.mrf.mxu0
  %v455 = vadd.f32 %v439, %v454
  %v456 = vpop.f32.mrf.mxu0
  %457 = vdwg.mxu0
  %v458 = vmax.f32 %v455, 0.0
  %v459 = vpack.c.bf16 %v458, %v458
  %v460 = vld [vmem:[%s10] sm:$0x1]
  %v461 = vld [vmem:[#allocation2] sm:$0x1]
  %463 = vset.pattern.permute.xlu0 0
  %464 = vperm.xlu0 %463, %v461
  %v465 = vpop.permute.xlu0 %464
  %v467 = vperm.slane %v465, 0
  %vm468 = vcmask 64512
  %v470 = vsel %vm468, %v460, 0
  %vm472 = vcmask 1043456
  %v474 = vsel %vm472, %v459, 0
  %476 = vmatpush.bf16.msra.mxu0 0
  %477 = vmatpush.bf16.msra.mxu0 0
  %478 = vmatpush.bf16.msra.mxu0 0
  %479 = vmatpush.bf16.msra.mxu0 0
  %480 = vmatpush.bf16.msra.mxu0 0
  %481 = vmatpush.bf16.msra.mxu0 0
  %482 = vmatpush.bf16.msra.mxu0 0
  %483 = vmatpush.bf16.msra.mxu0 %v474
  %484 = vmatmul.bf16.gmra.mxu0 %v470
  %v485 = vpop.f32.mrf.mxu0
  %v486 = vadd.f32 %v467, %v485
  %v487 = vpop.f32.mrf.mxu0
  %488 = vdwg.mxu0
  %v489 = vxor.u32 %v486, 2147483648
  %v490 = vmul.f32 %v489, 1.442695
  %v491 = vpow.pop %v490
  %v492 = vadd.f32 %v491, 1.0
  %v493 = vrcp.pop %v492
  %v494 = vmul.f32 %v492, %v493
  %v495 = vsub.f32 1.0, %v494
  %v496 = vmul.f32 %v493, %v495
  %v497 = vadd.f32 %v493, %v496
  %vm498 = vweird.f32 %v492
  %vm499 = vweird.f32 %v493
  %vm500 = vmor %vm498, %vm499
  %v501 = vsel %vm500, %v493, %v497
  %v502 = vand.u32 2147483647, %v492
  %vm503 = vcmp.eq.f32.partialorder %v502, 8.507059e+37
  %v504 = vand.u32 %v492, 2147483648
  %v505 = vor.u32 1.1754944e-38, %v504
  %v506 = vsel %vm503, %v505, %v501
  %v507 = vmul.f32 1.0, %v506
  %508 = vst [vmem:[%s12] sm:$0x1] %v507
  // Predicated region
  $region50: #{mlp_forward.1} parent=0 // pred_check
    _
  $region51: #{mlp_forward.1} parent=0 // pred_check_branch
    %510 = sbr.rel (0) target = $region53
  $region52: #{mlp_forward.1} parent=0 // pred_region
    _
  $region53: #{mlp_forward.1} parent=0 // pred_fallthru
    _
  // Predicated region
  $region54: #{mlp_forward.1} parent=0 // pred_check
    _
  $region55: #{mlp_forward.1} parent=0 // pred_check_branch
    %512 = sbr.rel (0) target = $region57
  $region56: #{mlp_forward.1} parent=0 // pred_region
    _
  $region57: #{mlp_forward.1} parent=0 // pred_fallthru
    _

</llo_original>
